<compile_context>
chip_gen: v7x
topology: tpu7x:2x2x1
jax: 0.10.0
libtpu: 0.0.40
codegen_flags: <defaults>
</compile_context>

<pallas_src>
from functools import partial

import jax
import jax.numpy as jnp
from jax.experimental import pallas as pl
from jax.experimental.pallas import tpu as pltpu

EPS = 0.1
NEG_SLOPE = 0.2
CHN_MID = 32


def _round_up(x, m):
    return ((x + m - 1) // m) * m


def _bce_ranking_kernel(d0_ref, d1_ref, j_ref, w1_ref, b1_ref, w2_ref, b2_ref,
                        w3_ref, b3_ref, out_ref, acc_ref, *, total_count):
    c = pl.program_id(0)                 # per-core (parallel) axis
    i = pl.program_id(1)                 # reduction (arbitrary) axis
    tp = d0_ref.shape[1]                 # pixels per tile (lane axis)

    d0 = d0_ref[...]                     # (1, TP) f32
    d1 = d1_ref[...]                     # (1, TP) f32
    judge = j_ref[...]                   # (1, TP) f32

    # --- Dist2LogitLayer feature build (divides via EUP reciprocal). ---
    # Concatenate in f32 then cast once: MXU streamed operand is bf16 so the
    # contracting dim of 5 is a single push group.
    r1 = pl.reciprocal(d1 + EPS, approx=False)
    r0 = pl.reciprocal(d0 + EPS, approx=False)
    feat = jnp.concatenate(
        [d0, d1, d0 - d1, d0 * r1, d1 * r0], axis=0).astype(jnp.bfloat16)

    # --- conv1 (5 -> 32, 1x1): bf16 MXU matmul, f32 accumulate + bias. ---
    h = jnp.dot(w1_ref[...], feat,
                preferred_element_type=jnp.float32) + b1_ref[...]   # (32, TP)
    h = jnp.maximum(h, NEG_SLOPE * h)    # LeakyReLU(0.2): mul+max, no select

    # --- conv2 (32 -> 32, 1x1): bf16 MXU matmul, f32 accumulate + bias. ---
    h = jnp.dot(w2_ref[...], h.astype(jnp.bfloat16),
                preferred_element_type=jnp.float32) + b2_ref[...]   # (32, TP)
    h = jnp.maximum(h, NEG_SLOPE * h)

    # --- conv3 (32 -> 1, 1x1): OFF the MXU.  32 VPU muls per pixel plus one
    # sublane reduction (XLU slot, otherwise idle) instead of streaming the
    # whole (32, TP) operand through the MXU for a single output row. ---
    z = jnp.sum(w3_ref[...] * h, axis=0, keepdims=True) + b3_ref[...]  # (1,TP)

    # BCE(sigmoid(z), per) with per = (judge + 1)/2, fused in logit space:
    #   bce = softplus(z) - per * z,  softplus(z) = max(z,0) + log1p(exp(-|z|))
    # (PyTorch's -100 log clamp only differs for |z| > 100; unreachable here.)
    per = (judge + 1.0) * 0.5
    softplus = jnp.maximum(z, 0.0) + jnp.log(1.0 + jnp.exp(-jnp.abs(z)))
    bce = softplus - per * z                                         # (1, TP)

    # Mask pixels that are only zero-padding.
    lane = jax.lax.broadcasted_iota(jnp.int32, (1, tp), 1)
    pix = (c * pl.num_programs(1) + i) * tp + lane
    bce = jnp.where(pix < total_count, bce, 0.0)

    @pl.when(i == 0)
    def _():
        acc_ref[...] = jnp.zeros_like(acc_ref)

    acc_ref[...] += bce                  # lane-wide VPU add, no reduce per step

    @pl.when(i == pl.num_programs(1) - 1)
    def _():
        out_ref[...] = acc_ref[...].reshape(out_ref.shape)


def bce_ranking_loss(d0, d1, judge, params, *, tile_p=32768):
    """d0, d1, judge: (N, 1, H, W) float32.  Returns scalar BCE ranking loss."""
    w1, b1, w2, b2, w3, b3 = params
    N, C, H, W = d0.shape
    assert C == 1
    assert tile_p % 128 == 0
    P = N * H * W

    # Three separate lane-major inputs (no wrapper stack / no extra XLA pass).
    d0f = d0.reshape(1, P).astype(jnp.float32)
    d1f = d1.reshape(1, P).astype(jnp.float32)
    jf = judge.reshape(1, P).astype(jnp.float32)

    tp = min(tile_p, _round_up(P, 128))       # pixels per grid step
    tiles = -(-P // tp)                       # ceil-div
    # 2-way split feeds a v7x megacore; only when there are >= 2 real tiles,
    # otherwise the second half would be pure padding work on 1-TC chips.
    if tiles >= 2:
        n_split = 2
        tiles = _round_up(tiles, 2)
    else:
        n_split = 1
    steps = tiles // n_split
    p_pad = tiles * tp
    if p_pad > P:
        pad = ((0, 0), (0, p_pad - P))        # zero pad; masked in kernel
        d0f = jnp.pad(d0f, pad)
        d1f = jnp.pad(d1f, pad)
        jf = jnp.pad(jf, pad)

    # MXU streamed weights in bf16 (cast once, not per grid step); biases and
    # accumulation stay f32.  conv3 weight is passed as a (32, 1) f32 column
    # because it is applied on the VPU, not the MXU.
    w1b = w1.astype(jnp.bfloat16)
    w2b = w2.astype(jnp.bfloat16)
    w3t = w3.reshape(CHN_MID, 1).astype(jnp.float32)
    b1f = b1.astype(jnp.float32)
    b2f = b2.astype(jnp.float32)
    b3f = b3.reshape(1, 1).astype(jnp.float32)

    kernel = partial(_bce_ranking_kernel, total_count=P)
    pix_spec = pl.BlockSpec((1, tp), lambda c, i: (0, c * steps + i))

    out = pl.pallas_call(
        kernel,
        out_shape=jax.ShapeDtypeStruct((n_split, 1, tp), jnp.float32),
        grid_spec=pltpu.PrefetchScalarGridSpec(
            num_scalar_prefetch=0,
            grid=(n_split, steps),
            in_specs=[
                pix_spec,                                            # d0
                pix_spec,                                            # d1
                pix_spec,                                            # judge
                pl.BlockSpec((CHN_MID, 5), lambda c, i: (0, 0)),     # w1 (bf16)
                pl.BlockSpec((CHN_MID, 1), lambda c, i: (0, 0)),     # b1
                pl.BlockSpec((CHN_MID, CHN_MID), lambda c, i: (0, 0)),  # w2
                pl.BlockSpec((CHN_MID, 1), lambda c, i: (0, 0)),     # b2
                pl.BlockSpec((CHN_MID, 1), lambda c, i: (0, 0)),     # w3^T
                pl.BlockSpec((1, 1), lambda c, i: (0, 0)),           # b3
            ],
            out_specs=pl.BlockSpec((1, 1, tp), lambda c, i: (c, 0, 0)),
            scratch_shapes=[pltpu.VMEM((1, tp), jnp.float32)],
        ),
        # TODO(synk): on v7x, confirm the leading "parallel" axis really shards
        # across both TensorCores; if the profile shows one TC doing all the
        # work, switch this axis to pltpu.CORE_PARALLEL (per-core accumulators
        # and output slabs are already in place).
        compiler_params=pltpu.CompilerParams(
            dimension_semantics=("parallel", "arbitrary"),
            vmem_limit_bytes=48 * 1024 * 1024),
    )(d0f, d1f, jf, w1b, b1f, w2b, b2f, w3t, b3f)

    # Final cross-lane reduction of the per-core lane-wide partials + 1/P.
    return jnp.sum(out) * (1.0 / P)


def init_params(key, chn_mid=CHN_MID):
    """Deterministic synthetic init of Dist2LogitLayer weights.

    PyTorch conv weights are (Cout, Cin, 1, 1); we store them channel-major as
    (Cout, Cin) matmul weights (kxk dims squeezed), biases as (Cout, 1)."""
    k1, k2, k3, k4, k5, k6 = jax.random.split(key, 6)
    w1 = 0.3 * jax.random.normal(k1, (chn_mid, 5), jnp.float32)
    b1 = 0.1 * jax.random.normal(k2, (chn_mid, 1), jnp.float32)
    w2 = 0.1 * jax.random.normal(k3, (chn_mid, chn_mid), jnp.float32)
    b2 = 0.1 * jax.random.normal(k4, (chn_mid, 1), jnp.float32)
    w3 = 0.2 * jax.random.normal(k5, (1, chn_mid), jnp.float32)
    b3 = 0.1 * jax.random.normal(k6, (1, 1), jnp.float32)
    return (w1, b1, w2, b2, w3, b3)


def reference_loss(d0, d1, judge, params, eps=EPS):
    """Pure-JAX f32 reference mirroring the PyTorch module (log(sigmoid) form)."""
    w1, b1, w2, b2, w3, b3 = params
    P = d0.size
    d0f = d0.reshape(1, P)
    d1f = d1.reshape(1, P)
    jf = judge.reshape(1, P)
    feat = jnp.concatenate(
        [d0f, d1f, d0f - d1f, d0f / (d1f + eps), d1f / (d0f + eps)], axis=0)
    h = jax.nn.leaky_relu(w1 @ feat + b1, NEG_SLOPE)
    h = jax.nn.leaky_relu(w2 @ h + b2, NEG_SLOPE)
    logit = jax.nn.sigmoid(w3 @ h + b3)
    per = (jf + 1.0) / 2.0
    log_p = jnp.maximum(jnp.log(logit), -100.0)         # PyTorch BCELoss clamp
    log_1mp = jnp.maximum(jnp.log(1.0 - logit), -100.0)
    return jnp.mean(-(per * log_p + (1.0 - per) * log_1mp))


if __name__ == "__main__":
    key = jax.random.PRNGKey(0)
    kp, k0, k1, k2 = jax.random.split(key, 4)

    N, H, W = 2, 16, 16
    # d0, d1 are LPIPS distances (non-negative); judge in [-1, 1].
    d0 = jax.random.uniform(k0, (N, 1, H, W), jnp.float32, 0.0, 1.0)
    d1 = jax.random.uniform(k1, (N, 1, H, W), jnp.float32, 0.0, 1.0)
    judge = jax.random.uniform(k2, (N, 1, H, W), jnp.float32, -1.0, 1.0)

    params = init_params(kp)

    loss = bce_ranking_loss(d0, d1, judge, params)
    loss = jax.block_until_ready(loss)

    ref = jax.block_until_ready(reference_loss(d0, d1, judge, params))
    # Kernel streams bf16 MXU operands (f32 accumulate), so compare against the
    # pure-f32 reference with a bf16-appropriate tolerance.
    assert jnp.allclose(loss, ref, rtol=1e-2, atol=1e-3), (loss, ref)

    print("KERNEL_OK")
</pallas_src>

<mosaic_0001>
module attributes {stable_mosaic.version = 11 : i64} {
  func.func @_bce_ranking_kernel(%arg0: i32, %arg1: i32, %arg2: memref<1x512xf32, #tpu.memory_space<vmem>>, %arg3: memref<1x512xf32, #tpu.memory_space<vmem>>, %arg4: memref<1x512xf32, #tpu.memory_space<vmem>>, %arg5: memref<32x5xbf16, #tpu.memory_space<vmem>>, %arg6: memref<32x1xf32, #tpu.memory_space<vmem>>, %arg7: memref<32x32xbf16, #tpu.memory_space<vmem>>, %arg8: memref<32x1xf32, #tpu.memory_space<vmem>>, %arg9: memref<32x1xf32, #tpu.memory_space<vmem>>, %arg10: memref<1x1xf32, #tpu.memory_space<vmem>>, %arg11: memref<1x1x512xf32, #tpu.memory_space<vmem>>, %arg12: memref<1x512xf32, #tpu.memory_space<vmem>>) attributes {dimension_semantics = [#tpu.dimension_semantics<parallel>, #tpu.dimension_semantics<arbitrary>], iteration_bounds = array<i64: 1, 1>, scalar_prefetch = 0 : i64, scratch_operands = 1 : i64, tpu.core_type = #tpu.core_type<tc>, window_params = [{transform_indices = @transform_0, window_bounds = array<i64: 1, 512>}, {transform_indices = @transform_1, window_bounds = array<i64: 1, 512>}, {transform_indices = @transform_2, window_bounds = array<i64: 1, 512>}, {pipeline_mode = #tpu.pipeline_mode<synchronous>, transform_indices = @transform_3, window_bounds = array<i64: 32, 5>}, {pipeline_mode = #tpu.pipeline_mode<synchronous>, transform_indices = @transform_4, window_bounds = array<i64: 32, 1>}, {pipeline_mode = #tpu.pipeline_mode<synchronous>, transform_indices = @transform_5, window_bounds = array<i64: 32, 32>}, {pipeline_mode = #tpu.pipeline_mode<synchronous>, transform_indices = @transform_6, window_bounds = array<i64: 32, 1>}, {pipeline_mode = #tpu.pipeline_mode<synchronous>, transform_indices = @transform_7, window_bounds = array<i64: 32, 1>}, {pipeline_mode = #tpu.pipeline_mode<synchronous>, transform_indices = @transform_8, window_bounds = array<i64: 1, 1>}, {transform_indices = @transform_9, window_bounds = array<i64: 1, 1, 512>}]} {
    %c0 = arith.constant 0 : index
    %c0_0 = arith.constant 0 : index
    %0 = vector.load %arg2[%c0, %c0_0] : memref<1x512xf32, #tpu.memory_space<vmem>>, vector<1x512xf32>
    %c0_1 = arith.constant 0 : index
    %c0_2 = arith.constant 0 : index
    %1 = vector.load %arg3[%c0_1, %c0_2] : memref<1x512xf32, #tpu.memory_space<vmem>>, vector<1x512xf32>
    %c0_3 = arith.constant 0 : index
    %c0_4 = arith.constant 0 : index
    %2 = vector.load %arg4[%c0_3, %c0_4] : memref<1x512xf32, #tpu.memory_space<vmem>>, vector<1x512xf32>
    %cst = arith.constant 1.000000e-01 : f32
    %3 = vector.broadcast %cst : f32 to vector<1x512xf32>
    %4 = arith.addf %1, %3 : vector<1x512xf32>
    %5 = tpu.reciprocal %4 : vector<1x512xf32> -> vector<1x512xf32>
    %cst_5 = arith.constant 1.000000e-01 : f32
    %6 = vector.broadcast %cst_5 : f32 to vector<1x512xf32>
    %7 = arith.addf %0, %6 : vector<1x512xf32>
    %8 = tpu.reciprocal %7 : vector<1x512xf32> -> vector<1x512xf32>
    %9 = arith.subf %0, %1 : vector<1x512xf32>
    %10 = arith.mulf %0, %5 : vector<1x512xf32>
    %11 = arith.mulf %1, %8 : vector<1x512xf32>
    %12 = tpu.concatenate %0, %1, %9, %10, %11 in 0 : vector<1x512xf32>, vector<1x512xf32>, vector<1x512xf32>, vector<1x512xf32>, vector<1x512xf32> -> vector<5x512xf32>
    %13 = arith.truncf %12 : vector<5x512xf32> to vector<5x512xbf16>
    %c0_6 = arith.constant 0 : index
    %c0_7 = arith.constant 0 : index
    %14 = vector.load %arg5[%c0_6, %c0_7] : memref<32x5xbf16, #tpu.memory_space<vmem>>, vector<32x5xbf16>
    %cst_8 = arith.constant dense<0.000000e+00> : vector<32x512xf32>
    %15 = tpu.matmul %14, %13, %cst_8 {dimension_numbers = #tpu.dot_dimension_numbers<[1], [0], [0], [1], [0, 0, 1, 1], [], []>} : vector<32x5xbf16>, vector<5x512xbf16>, vector<32x512xf32> -> vector<32x512xf32>
    %c0_9 = arith.constant 0 : index
    %c0_10 = arith.constant 0 : index
    %16 = vector.load %arg6[%c0_9, %c0_10] : memref<32x1xf32, #tpu.memory_space<vmem>>, vector<32x1xf32>
    %17 = vector.broadcast %16 : vector<32x1xf32> to vector<32x512xf32>
    %18 = arith.addf %15, %17 : vector<32x512xf32>
    %cst_11 = arith.constant 2.000000e-01 : f32
    %19 = vector.broadcast %cst_11 : f32 to vector<32x512xf32>
    %20 = arith.mulf %19, %18 : vector<32x512xf32>
    %21 = arith.maximumf %18, %20 : vector<32x512xf32>
    %c0_12 = arith.constant 0 : index
    %c0_13 = arith.constant 0 : index
    %22 = vector.load %arg7[%c0_12, %c0_13] : memref<32x32xbf16, #tpu.memory_space<vmem>>, vector<32x32xbf16>
    %23 = arith.truncf %21 : vector<32x512xf32> to vector<32x512xbf16>
    %cst_14 = arith.constant dense<0.000000e+00> : vector<32x512xf32>
    %24 = tpu.matmul %22, %23, %cst_14 {dimension_numbers = #tpu.dot_dimension_numbers<[1], [0], [0], [1], [0, 0, 1, 1], [], []>} : vector<32x32xbf16>, vector<32x512xbf16>, vector<32x512xf32> -> vector<32x512xf32>
    %c0_15 = arith.constant 0 : index
    %c0_16 = arith.constant 0 : index
    %25 = vector.load %arg8[%c0_15, %c0_16] : memref<32x1xf32, #tpu.memory_space<vmem>>, vector<32x1xf32>
    %26 = vector.broadcast %25 : vector<32x1xf32> to vector<32x512xf32>
    %27 = arith.addf %24, %26 : vector<32x512xf32>
    %cst_17 = arith.constant 2.000000e-01 : f32
    %28 = vector.broadcast %cst_17 : f32 to vector<32x512xf32>
    %29 = arith.mulf %28, %27 : vector<32x512xf32>
    %30 = arith.maximumf %27, %29 : vector<32x512xf32>
    %c0_18 = arith.constant 0 : index
    %c0_19 = arith.constant 0 : index
    %31 = vector.load %arg9[%c0_18, %c0_19] : memref<32x1xf32, #tpu.memory_space<vmem>>, vector<32x1xf32>
    %32 = vector.broadcast %31 : vector<32x1xf32> to vector<32x512xf32>
    %33 = arith.mulf %32, %30 : vector<32x512xf32>
    %cst_20 = arith.constant dense<0.000000e+00> : vector<512xf32>
    %34 = vector.multi_reduction <add>, %33, %cst_20 [0] : vector<32x512xf32> to vector<512xf32>
    %35 = vector.shape_cast %34 : vector<512xf32> to vector<1x512xf32>
    %c0_21 = arith.constant 0 : index
    %c0_22 = arith.constant 0 : index
    %36 = vector.load %arg10[%c0_21, %c0_22] : memref<1x1xf32, #tpu.memory_space<vmem>>, vector<1x1xf32>
    %37 = vector.broadcast %36 : vector<1x1xf32> to vector<1x512xf32>
    %38 = arith.addf %35, %37 : vector<1x512xf32>
    %cst_23 = arith.constant 1.000000e+00 : f32
    %39 = vector.broadcast %cst_23 : f32 to vector<1x512xf32>
    %40 = arith.addf %2, %39 : vector<1x512xf32>
    %cst_24 = arith.constant 5.000000e-01 : f32
    %41 = vector.broadcast %cst_24 : f32 to vector<1x512xf32>
    %42 = arith.mulf %40, %41 : vector<1x512xf32>
    %cst_25 = arith.constant 0.000000e+00 : f32
    %43 = vector.broadcast %cst_25 : f32 to vector<1x512xf32>
    %44 = arith.maximumf %38, %43 : vector<1x512xf32>
    %45 = math.absf %38 : vector<1x512xf32>
    %cst_26 = arith.constant 0.000000e+00 : f32
    %46 = vector.broadcast %cst_26 : f32 to vector<1x512xf32>
    %47 = arith.subf %46, %45 : vector<1x512xf32>
    %48 = math.exp %47 : vector<1x512xf32>
    %cst_27 = arith.constant 1.000000e+00 : f32
    %49 = vector.broadcast %cst_27 : f32 to vector<1x512xf32>
    %50 = arith.addf %49, %48 : vector<1x512xf32>
    %51 = math.log %50 : vector<1x512xf32>
    %52 = arith.addf %44, %51 : vector<1x512xf32>
    %53 = arith.mulf %42, %38 : vector<1x512xf32>
    %54 = arith.subf %52, %53 : vector<1x512xf32>
    %55 = tpu.iota {dimensions = array<i32: 1>} : vector<1x512xi32>
    %c1_i32 = arith.constant 1 : i32
    %56 = arith.muli %arg0, %c1_i32 : i32
    %57 = arith.addi %56, %arg1 : i32
    %c512_i32 = arith.constant 512 : i32
    %58 = arith.muli %57, %c512_i32 : i32
    %59 = vector.broadcast %58 : i32 to vector<1x512xi32>
    %60 = arith.addi %59, %55 : vector<1x512xi32>
    %c512_i32_28 = arith.constant 512 : i32
    %61 = vector.broadcast %c512_i32_28 : i32 to vector<1x512xi32>
    %62 = arith.cmpi slt, %60, %61 : vector<1x512xi32>
    %cst_29 = arith.constant 0.000000e+00 : f32
    %63 = vector.broadcast %cst_29 : f32 to vector<1x512xf32>
    %64 = arith.select %62, %54, %63 : vector<1x512xi1>, vector<1x512xf32>
    %c0_i32 = arith.constant 0 : i32
    %65 = arith.cmpi eq, %arg1, %c0_i32 : i32
    %66 = arith.extui %65 : i1 to i32
    %c0_i32_30 = arith.constant 0 : i32
    %67 = arith.cmpi ne, %66, %c0_i32_30 : i32
    scf.if %67 {
      %cst_37 = arith.constant 0.000000e+00 : f32
      %74 = vector.broadcast %cst_37 : f32 to vector<1x512xf32>
      %c0_38 = arith.constant 0 : index
      %c0_39 = arith.constant 0 : index
      %75 = vector.load %arg12[%c0_38, %c0_39] : memref<1x512xf32, #tpu.memory_space<vmem>>, vector<1x512xf32>
      tpu.vector_store %arg12[%c0_38, %c0_39], %74 {strides = array<i32>} : memref<1x512xf32, #tpu.memory_space<vmem>>, vector<1x512xf32>,
    } else {
    }
    %c0_31 = arith.constant 0 : index
    %c0_32 = arith.constant 0 : index
    %68 = vector.load %arg12[%c0_31, %c0_32] : memref<1x512xf32, #tpu.memory_space<vmem>>, vector<1x512xf32>
    %69 = arith.addf %68, %64 : vector<1x512xf32>
    %c0_33 = arith.constant 0 : index
    %c0_34 = arith.constant 0 : index
    %70 = vector.load %arg12[%c0_33, %c0_34] : memref<1x512xf32, #tpu.memory_space<vmem>>, vector<1x512xf32>
    tpu.vector_store %arg12[%c0_33, %c0_34], %69 {strides = array<i32>} : memref<1x512xf32, #tpu.memory_space<vmem>>, vector<1x512xf32>,
    %c0_i32_35 = arith.constant 0 : i32
    %71 = arith.cmpi eq, %arg1, %c0_i32_35 : i32
    %72 = arith.extui %71 : i1 to i32
    %c0_i32_36 = arith.constant 0 : i32
    %73 = arith.cmpi ne, %72, %c0_i32_36 : i32
    scf.if %73 {
      %c0_37 = arith.constant 0 : index
      %c0_38 = arith.constant 0 : index
      %74 = vector.load %arg12[%c0_37, %c0_38] : memref<1x512xf32, #tpu.memory_space<vmem>>, vector<1x512xf32>
      %75 = vector.shape_cast %74 : vector<1x512xf32> to vector<1x1x512xf32>
      %c0_39 = arith.constant 0 : index
      %c0_40 = arith.constant 0 : index
      %c0_41 = arith.constant 0 : index
      %76 = vector.load %arg11[%c0_39, %c0_40, %c0_41] : memref<1x1x512xf32, #tpu.memory_space<vmem>>, vector<1x1x512xf32>
      tpu.vector_store %arg11[%c0_39, %c0_40, %c0_41], %75 {strides = array<i32>} : memref<1x1x512xf32, #tpu.memory_space<vmem>>, vector<1x1x512xf32>,
    } else {
    }
    return
  }
  func.func @transform_0(%arg0: i32, %arg1: i32) -> (i32, i32) {
    %c1_i32 = arith.constant 1 : i32
    %0 = arith.muli %arg0, %c1_i32 : i32
    %1 = arith.addi %0, %arg1 : i32
    %c0_i32 = arith.constant 0 : i32
    %c0_i32_0 = arith.constant 0 : i32
    return %c0_i32, %1 : i32, i32
  }
  func.func @transform_1(%arg0: i32, %arg1: i32) -> (i32, i32) {
    %c1_i32 = arith.constant 1 : i32
    %0 = arith.muli %arg0, %c1_i32 : i32
    %1 = arith.addi %0, %arg1 : i32
    %c0_i32 = arith.constant 0 : i32
    %c0_i32_0 = arith.constant 0 : i32
    return %c0_i32, %1 : i32, i32
  }
  func.func @transform_2(%arg0: i32, %arg1: i32) -> (i32, i32) {
    %c1_i32 = arith.constant 1 : i32
    %0 = arith.muli %arg0, %c1_i32 : i32
    %1 = arith.addi %0, %arg1 : i32
    %c0_i32 = arith.constant 0 : i32
    %c0_i32_0 = arith.constant 0 : i32
    return %c0_i32, %1 : i32, i32
  }
  func.func @transform_3(%arg0: i32, %arg1: i32) -> (i32, i32) {
    %c0_i32 = arith.constant 0 : i32
    %c0_i32_0 = arith.constant 0 : i32
    %c0_i32_1 = arith.constant 0 : i32
    return %c0_i32, %c0_i32_0 : i32, i32
  }
  func.func @transform_4(%arg0: i32, %arg1: i32) -> (i32, i32) {
    %c0_i32 = arith.constant 0 : i32
    %c0_i32_0 = arith.constant 0 : i32
    %c0_i32_1 = arith.constant 0 : i32
    return %c0_i32, %c0_i32_0 : i32, i32
  }
  func.func @transform_5(%arg0: i32, %arg1: i32) -> (i32, i32) {
    %c0_i32 = arith.constant 0 : i32
    %c0_i32_0 = arith.constant 0 : i32
    %c0_i32_1 = arith.constant 0 : i32
    return %c0_i32, %c0_i32_0 : i32, i32
  }
  func.func @transform_6(%arg0: i32, %arg1: i32) -> (i32, i32) {
    %c0_i32 = arith.constant 0 : i32
    %c0_i32_0 = arith.constant 0 : i32
    %c0_i32_1 = arith.constant 0 : i32
    return %c0_i32, %c0_i32_0 : i32, i32
  }
  func.func @transform_7(%arg0: i32, %arg1: i32) -> (i32, i32) {
    %c0_i32 = arith.constant 0 : i32
    %c0_i32_0 = arith.constant 0 : i32
    %c0_i32_1 = arith.constant 0 : i32
    return %c0_i32, %c0_i32_0 : i32, i32
  }
  func.func @transform_8(%arg0: i32, %arg1: i32) -> (i32, i32) {
    %c0_i32 = arith.constant 0 : i32
    %c0_i32_0 = arith.constant 0 : i32
    %c0_i32_1 = arith.constant 0 : i32
    return %c0_i32, %c0_i32_0 : i32, i32
  }
  func.func @transform_9(%arg0: i32, %arg1: i32) -> (i32, i32, i32) {
    %c0_i32 = arith.constant 0 : i32
    %c0_i32_0 = arith.constant 0 : i32
    %c0_i32_1 = arith.constant 0 : i32
    return %arg0, %c0_i32, %c0_i32_0 : i32, i32, i32
  }
}

</mosaic_0001>

<llo_original>
// kernel: tpu_custom_call.1
$region0: #{tpu_custom_call.1}
  #allocation0 [shape = 'u32[]', space=smem, size = 0x4, offset = 0x4, fixed_abs, tag = 'smem constant byte address 0x4 - core index']
  #allocation1 [shape = 'u32[144,128]{1,0:T(1,128)}', space=vmem, size = 0x12000, scoped, tag = 'internal scratch']
  #allocation2 [shape = 'f32[1,512]{1,0:T(1,128)}', space=vmem, size = 0x800, scoped, tag = 'scratch operand']
  #allocation3 [shape = 'f32[1,1]{1,0:T(1,128)S(1)}', space=vmem, size = 0x200, scoped, tag = 'scoped memory for tpu_custom_call.1']
  %s0 = inlined_call_operand.vmem [shape: f32[1,512], index: 0, kind: input, shape index: {}]
  %s1 = inlined_call_operand.vmem [shape: f32[1,512], index: 1, kind: input, shape index: {}]
  %s2 = inlined_call_operand.vmem [shape: f32[1,512], index: 2, kind: input, shape index: {}]
  %s3 = inlined_call_operand.vmem [shape: bf16[32,5], index: 3, kind: input, shape index: {}]
  %s4 = inlined_call_operand.vmem [shape: f32[32,1], index: 4, kind: input, shape index: {}]
  %s5 = inlined_call_operand.vmem [shape: bf16[32,32], index: 5, kind: input, shape index: {}]
  %s6 = inlined_call_operand.vmem [shape: f32[32,1], index: 6, kind: input, shape index: {}]
  %s7 = inlined_call_operand.vmem [shape: f32[32,1], index: 7, kind: input, shape index: {}]
  %s8 = inlined_call_operand.<no memory space> [shape: f32[1,1], index: 8, kind: input, shape index: {}]
  %s9 = inlined_call_operand.hbm [shape: f32[1,1,512], index: 9, kind: output, shape index: {}]
  %s10 = sld [smem:[#allocation0]]
  $region54: #{tpu_custom_call.1} parent=0
    _
  %s12 = ssub.s32 1, %s10
  %s13 = scalar_select 0, %s12, %s10
  %v14 = vstv %s8
  %15 = vst [vmem:[#allocation3] sm:$0x1] %v14
  $region1: #{tpu_custom_call.1} parent=0
    #allocation4 [shape = 'u8[2048]{0}', space=vmem, size = 0x800, scoped, tag = 'output window, operand 0, single buffered']
    #allocation5 [shape = 's32[1]{0}', space=sflag, size = 0x4, scoped, tag = 'scoped memory for tpu_custom_call.1']
    %16 = vsyncpa [#allocation5], 0
    // Predicated region
    $region2: #{tpu_custom_call.1} parent=1 // pred_check
      _
    $region3: #{tpu_custom_call.1} parent=1 // pred_check_branch
      %18 = sbr.rel (0) target = $region5
    $region4: #{tpu_custom_call.1} parent=1 // pred_region
      %s19 = sadd.s32 0, 0
      %s20 = smul.u32 4, %s19
      %p21 = scmp.lt.s32.totalorder %s20, 3
      %s22 = scalar_select %p21, %s20, 3
      %s23 = scalar_lea.vmem %s0, %s22
      %s24 = sadd.s32 0, 0
      %s25 = smul.u32 4, %s24
    $region5: #{tpu_custom_call.1} parent=1 // pred_fallthru
      _
    // Predicated region
    $region6: #{tpu_custom_call.1} parent=1 // pred_check
      _
    $region7: #{tpu_custom_call.1} parent=1 // pred_check_branch
      %27 = sbr.rel (0) target = $region9
    $region8: #{tpu_custom_call.1} parent=1 // pred_region
      %s28 = sadd.s32 0, 0
      %s29 = smul.u32 4, %s28
      %p30 = scmp.lt.s32.totalorder %s29, 3
      %s31 = scalar_select %p30, %s29, 3
      %s32 = scalar_lea.vmem %s1, %s31
      %s33 = sadd.s32 0, 0
      %s34 = smul.u32 4, %s33
    $region9: #{tpu_custom_call.1} parent=1 // pred_fallthru
      _
    // Predicated region
    $region10: #{tpu_custom_call.1} parent=1 // pred_check
      _
    $region11: #{tpu_custom_call.1} parent=1 // pred_check_branch
      %36 = sbr.rel (0) target = $region13
    $region12: #{tpu_custom_call.1} parent=1 // pred_region
      %s37 = sadd.s32 0, 0
      %s38 = smul.u32 4, %s37
      %p39 = scmp.lt.s32.totalorder %s38, 3
      %s40 = scalar_select %p39, %s38, 3
      %s41 = scalar_lea.vmem %s2, %s40
      %s42 = sadd.s32 0, 0
      %s43 = smul.u32 4, %s42
    $region13: #{tpu_custom_call.1} parent=1 // pred_fallthru
      _
    // Predicated region
    $region14: #{tpu_custom_call.1} parent=1 // pred_check
      _
    $region15: #{tpu_custom_call.1} parent=1 // pred_check_branch
      %45 = sbr.rel (0) target = $region17
    $region16: #{tpu_custom_call.1} parent=1 // pred_region
      _
    $region17: #{tpu_custom_call.1} parent=1 // pred_fallthru
      _
    // Predicated region
    $region18: #{tpu_custom_call.1} parent=1 // pred_check
      _
    $region19: #{tpu_custom_call.1} parent=1 // pred_check_branch
      %47 = sbr.rel (0) target = $region21
    $region20: #{tpu_custom_call.1} parent=1 // pred_region
      _
    $region21: #{tpu_custom_call.1} parent=1 // pred_fallthru
      _
    // Predicated region
    $region22: #{tpu_custom_call.1} parent=1 // pred_check
      _
    $region23: #{tpu_custom_call.1} parent=1 // pred_check_branch
      %49 = sbr.rel (0) target = $region25
    $region24: #{tpu_custom_call.1} parent=1 // pred_region
      _
    $region25: #{tpu_custom_call.1} parent=1 // pred_fallthru
      _
    // Predicated region
    $region26: #{tpu_custom_call.1} parent=1 // pred_check
      _
    $region27: #{tpu_custom_call.1} parent=1 // pred_check_branch
      %51 = sbr.rel (0) target = $region29
    $region28: #{tpu_custom_call.1} parent=1 // pred_region
      _
    $region29: #{tpu_custom_call.1} parent=1 // pred_fallthru
      _
    // Predicated region
    $region30: #{tpu_custom_call.1} parent=1 // pred_check
      _
    $region31: #{tpu_custom_call.1} parent=1 // pred_check_branch
      %53 = sbr.rel (0) target = $region33
    $region32: #{tpu_custom_call.1} parent=1 // pred_region
      _
    $region33: #{tpu_custom_call.1} parent=1 // pred_fallthru
      _
    // Predicated region
    $region34: #{tpu_custom_call.1} parent=1 // pred_check
      _
    $region35: #{tpu_custom_call.1} parent=1 // pred_check_branch
      %55 = sbr.rel (0) target = $region37
    $region36: #{tpu_custom_call.1} parent=1 // pred_region
      _
    $region37: #{tpu_custom_call.1} parent=1 // pred_fallthru
      _
    %s56 = sadd.s32 0, 0
    %s57 = smul.u32 4, %s56
    %p58 = scmp.lt.s32.totalorder %s57, 3
    %s59 = scalar_select %p58, %s57, 3
    %s60 = scalar_lea.vmem %s0, %s59
    %s61 = sadd.s32 0, 0
    %s62 = smul.u32 4, %s61
    %p63 = scmp.lt.s32.totalorder %s62, 3
    %s64 = scalar_select %p63, %s62, 3
    %s65 = scalar_lea.vmem %s1, %s64
    %s66 = sadd.s32 0, 0
    %s67 = smul.u32 4, %s66
    %p68 = scmp.lt.s32.totalorder %s67, 3
    %s69 = scalar_select %p68, %s67, 3
    %s70 = scalar_lea.vmem %s2, %s69
    %s71 = sadd.s32 0, 0
    %s72 = smul.u32 4, %s71
    %p73 = scmp.lt.s32.totalorder %s72, 3
    %s74 = scalar_select %p73, %s72, 3
    %s75 = scalar_lea.vmem %s0, %s74
    %s76 = sadd.s32 0, 0
    %s77 = smul.u32 4, %s76
    %s78 = sadd.s32 0, 0
    %s79 = smul.u32 4, %s78
    %p80 = scmp.lt.s32.totalorder %s79, 3
    %s81 = scalar_select %p80, %s79, 3
    %s82 = scalar_lea.vmem %s1, %s81
    %s83 = sadd.s32 0, 0
    %s84 = smul.u32 4, %s83
    %s85 = sadd.s32 0, 0
    %s86 = smul.u32 4, %s85
    %p87 = scmp.lt.s32.totalorder %s86, 3
    %s88 = scalar_select %p87, %s86, 3
    %s89 = scalar_lea.vmem %s2, %s88
    %s90 = sadd.s32 0, 0
    %s91 = smul.u32 4, %s90
    %v93 = vld [vmem:[%s75] sm:$0xf]
    %v94 = vld [vmem:[%s82] sm:$0xf]
    %v95 = vld [vmem:[%s89] sm:$0xf]
    %v96 = vadd.f32 %v94, 0.1
    %v97 = vrcp.pop %v96
    %v98 = vadd.f32 %v93, 0.1
    %v99 = vrcp.pop %v98
    %v100 = vsub.f32 %v93, %v94
    %v101 = vmul.f32 %v93, %v97
    %v102 = vmul.f32 %v94, %v99
    %v104 = vlaneseq
    %v105 = vshrl.u32 %v104, 7
    %v106 = vsub.s32 0, %v105
    %v107 = vrot.slane %v93, %v106
    %v108 = vlaneseq
    %v109 = vshrl.u32 %v108, 7
    %v110 = vsub.s32 1, %v109
    %v111 = vrot.slane %v93, %v110
    %v112 = vlaneseq
    %v113 = vshrl.u32 %v112, 7
    %v114 = vsub.s32 2, %v113
    %v115 = vrot.slane %v93, %v114
    %v116 = vlaneseq
    %v117 = vshrl.u32 %v116, 7
    %v118 = vsub.s32 3, %v117
    %v119 = vrot.slane %v93, %v118
    %v125 = vlaneseq
    %v126 = vshrl.u32 %v125, 7
    %v127 = vsub.s32 0, %v126
    %v128 = vrot.slane %v94, %v127
    %v129 = vlaneseq
    %v130 = vshrl.u32 %v129, 7
    %v131 = vsub.s32 1, %v130
    %v132 = vrot.slane %v94, %v131
    %v133 = vlaneseq
    %v134 = vshrl.u32 %v133, 7
    %v135 = vsub.s32 2, %v134
    %v136 = vrot.slane %v94, %v135
    %v137 = vlaneseq
    %v138 = vshrl.u32 %v137, 7
    %v139 = vsub.s32 3, %v138
    %v140 = vrot.slane %v94, %v139
    %v146 = vlaneseq
    %v147 = vshrl.u32 %v146, 7
    %v148 = vsub.s32 0, %v147
    %v149 = vrot.slane %v100, %v148
    %v150 = vlaneseq
    %v151 = vshrl.u32 %v150, 7
    %v152 = vsub.s32 1, %v151
    %v153 = vrot.slane %v100, %v152
    %v154 = vlaneseq
    %v155 = vshrl.u32 %v154, 7
    %v156 = vsub.s32 2, %v155
    %v157 = vrot.slane %v100, %v156
    %v158 = vlaneseq
    %v159 = vshrl.u32 %v158, 7
    %v160 = vsub.s32 3, %v159
    %v161 = vrot.slane %v100, %v160
    %v167 = vlaneseq
    %v168 = vshrl.u32 %v167, 7
    %v169 = vsub.s32 0, %v168
    %v170 = vrot.slane %v101, %v169
    %v171 = vlaneseq
    %v172 = vshrl.u32 %v171, 7
    %v173 = vsub.s32 1, %v172
    %v174 = vrot.slane %v101, %v173
    %v175 = vlaneseq
    %v176 = vshrl.u32 %v175, 7
    %v177 = vsub.s32 2, %v176
    %v178 = vrot.slane %v101, %v177
    %v179 = vlaneseq
    %v180 = vshrl.u32 %v179, 7
    %v181 = vsub.s32 3, %v180
    %v182 = vrot.slane %v101, %v181
    %v188 = vlaneseq
    %v189 = vshrl.u32 %v188, 7
    %v190 = vsub.s32 0, %v189
    %v191 = vrot.slane %v102, %v190
    %v192 = vlaneseq
    %v193 = vshrl.u32 %v192, 7
    %v194 = vsub.s32 1, %v193
    %v195 = vrot.slane %v102, %v194
    %v196 = vlaneseq
    %v197 = vshrl.u32 %v196, 7
    %v198 = vsub.s32 2, %v197
    %v199 = vrot.slane %v102, %v198
    %v200 = vlaneseq
    %v201 = vshrl.u32 %v200, 7
    %v202 = vsub.s32 3, %v201
    %v203 = vrot.slane %v102, %v202
    %vm208 = vcmask 1040384
    %v209 = vsel %vm208, %v107, %v128
    %v210 = vsel %vm208, %v111, %v132
    %v211 = vsel %vm208, %v115, %v136
    %v212 = vsel %vm208, %v119, %v140
    %vm213 = vcmask 1041408
    %v214 = vsel %vm213, %v209, %v149
    %v215 = vsel %vm213, %v210, %v153
    %v216 = vsel %vm213, %v211, %v157
    %v217 = vsel %vm213, %v212, %v161
    %vm218 = vcmask 1042432
    %v219 = vsel %vm218, %v214, %v170
    %v220 = vsel %vm218, %v215, %v174
    %v221 = vsel %vm218, %v216, %v178
    %v222 = vsel %vm218, %v217, %v182
    %vm223 = vcmask 1043456
    %v224 = vsel %vm223, %v219, %v191
    %v225 = vsel %vm223, %v220, %v195
    %v226 = vsel %vm223, %v221, %v199
    %v227 = vsel %vm223, %v222, %v203
    %v228 = vpack.c.bf16 %v224, %v224
    %v229 = vpack.c.bf16 %v225, %v225
    %v230 = vpack.c.bf16 %v226, %v226
    %v231 = vpack.c.bf16 %v227, %v227
    %v232 = vld [vmem:[%s3] sm:$0xf]
    %v233 = vld [vmem:[%s3 + $0x4] sm:$0xf]
    %v234 = vld [vmem:[%s3 + $0x8] sm:$0xf]
    %v235 = vld [vmem:[%s3 + $0xc] sm:$0xf]
    %v236 = vld [vmem:[%s4] sm:$0xff]
    %v237 = vld [vmem:[%s4 + $0x8] sm:$0xff]
    %v238 = vld [vmem:[%s4 + $0x10] sm:$0xff]
    %v239 = vld [vmem:[%s4 + $0x18] sm:$0xff]
    %241 = vset.pattern.permute.xlu0 0
    %242 = vperm.xlu0 %241, %v236
    %v243 = vpop.permute.xlu0 %242
    %246 = vset.pattern.permute.xlu0 0
    %247 = vperm.xlu0 %246, %v237
    %v248 = vpop.permute.xlu0 %247
    %251 = vset.pattern.permute.xlu0 0
    %252 = vperm.xlu0 %251, %v238
    %v253 = vpop.permute.xlu0 %252
    %256 = vset.pattern.permute.xlu0 0
    %257 = vperm.xlu0 %256, %v239
    %v258 = vpop.permute.xlu0 %257
    %v264 = vunpack.c.l.b16 %v232
    %v265 = vunpack.c.l.b16 %v233
    %v266 = vunpack.c.l.b16 %v234
    %v267 = vunpack.c.l.b16 %v235
    %v268 = vpack.c.b16 %v265, %v264
    %v269 = vpack.c.b16 %v267, %v266
    %vm270 = vcmask 39936
    %v272 = vsel %vm270, %v268, 0
    %v275 = vsel %vm270, %v269, 0
    %v277 = vsel %vm213, 4294967295, 65535
    %v278 = vsel %vm218, %v277, 0
    %v280 = vand.u32 %v228, %v278
    %v283 = vand.u32 %v229, %v278
    %v286 = vand.u32 %v230, %v278
    %v289 = vand.u32 %v231, %v278
    %291 = vmatprep.subr.bf16.mxu0 %v283
    %292 = vmatpush1.bf16.msra.mxu0 %v280
    %293 = vmatprep.subr.bf16.mxu0 0
    %294 = vmatpush1.bf16.msra.mxu0 0
    %295 = vmatprep.subr.bf16.mxu0 0
    %296 = vmatpush1.bf16.msra.mxu0 0
    %297 = vmatprep.subr.bf16.mxu0 0
    %298 = vmatpush1.bf16.msra.mxu0 0
    %299 = vmatprep.subr.bf16.mxu0 0
    %300 = vmatpush1.bf16.msra.mxu0 0
    %301 = vmatprep.subr.bf16.mxu0 0
    %302 = vmatpush1.bf16.msra.mxu0 0
    %303 = vmatprep.subr.bf16.mxu0 0
    %304 = vmatpush1.bf16.msra.mxu0 0
    %305 = vmatprep.subr.bf16.mxu0 0
    %306 = vmatpush1.bf16.msra.mxu0 0
    %307 = vmatprep.subr.bf16.mxu0 0
    %308 = vmatpush1.bf16.msra.mxu0 0
    %309 = vmatprep.subr.bf16.mxu0 0
    %310 = vmatpush1.bf16.msra.mxu0 0
    %311 = vmatprep.subr.bf16.mxu0 0
    %312 = vmatpush1.bf16.msra.mxu0 0
    %313 = vmatprep.subr.bf16.mxu0 0
    %314 = vmatpush1.bf16.msra.mxu0 0
    %315 = vmatprep.subr.bf16.mxu0 0
    %316 = vmatpush1.bf16.msra.mxu0 0
    %317 = vmatprep.subr.bf16.mxu0 0
    %318 = vmatpush1.bf16.msra.mxu0 0
    %319 = vmatprep.subr.bf16.mxu0 0
    %320 = vmatpush1.bf16.msra.mxu0 0
    %321 = vmatprep.subr.bf16.mxu0 0
    %322 = vmatpush1.bf16.msra.mxu0 0
    %323 = vmatprep.mubr.bf16.mxu0 0
    %324 = vmatmul.mubr.bf16.gmra.mrb[0].mxu0 %v272
    %v325 = vpop.f32.mrb[0].mxu0
    %v326 = vadd.f32 %v243, %v325
    %v327 = vpop.f32.mrb[0].mxu0
    %v328 = vadd.f32 %v243, %v327
    %v329 = vpop.f32.mrb[0].mxu0
    %v330 = vadd.f32 %v248, %v329
    %v331 = vpop.f32.mrb[0].mxu0
    %v332 = vadd.f32 %v248, %v331
    %333 = vmatprep.mubr.bf16.mxu0 0
    %334 = vmatmul.mubr.bf16.gmra.mrb[0].mxu0 %v275
    %v335 = vpop.f32.mrb[0].mxu0
    %v336 = vadd.f32 %v253, %v335
    %v337 = vpop.f32.mrb[0].mxu0
    %v338 = vadd.f32 %v253, %v337
    %v339 = vpop.f32.mrb[0].mxu0
    %v340 = vadd.f32 %v258, %v339
    %v341 = vpop.f32.mrb[0].mxu0
    %v342 = vadd.f32 %v258, %v341
    %343 = vdwg.mxu0
    %344 = vmatprep.subr.bf16.mxu0 %v289
    %345 = vmatpush1.bf16.msra.mxu0 %v286
    %346 = vmatprep.subr.bf16.mxu0 0
    %347 = vmatpush1.bf16.msra.mxu0 0
    %348 = vmatprep.subr.bf16.mxu0 0
    %349 = vmatpush1.bf16.msra.mxu0 0
    %350 = vmatprep.subr.bf16.mxu0 0
    %351 = vmatpush1.bf16.msra.mxu0 0
    %352 = vmatprep.subr.bf16.mxu0 0
    %353 = vmatpush1.bf16.msra.mxu0 0
    %354 = vmatprep.subr.bf16.mxu0 0
    %355 = vmatpush1.bf16.msra.mxu0 0
    %356 = vmatprep.subr.bf16.mxu0 0
    %357 = vmatpush1.bf16.msra.mxu0 0
    %358 = vmatprep.subr.bf16.mxu0 0
    %359 = vmatpush1.bf16.msra.mxu0 0
    %360 = vmatprep.subr.bf16.mxu0 0
    %361 = vmatpush1.bf16.msra.mxu0 0
    %362 = vmatprep.subr.bf16.mxu0 0
    %363 = vmatpush1.bf16.msra.mxu0 0
    %364 = vmatprep.subr.bf16.mxu0 0
    %365 = vmatpush1.bf16.msra.mxu0 0
    %366 = vmatprep.subr.bf16.mxu0 0
    %367 = vmatpush1.bf16.msra.mxu0 0
    %368 = vmatprep.subr.bf16.mxu0 0
    %369 = vmatpush1.bf16.msra.mxu0 0
    %370 = vmatprep.subr.bf16.mxu0 0
    %371 = vmatpush1.bf16.msra.mxu0 0
    %372 = vmatprep.subr.bf16.mxu0 0
    %373 = vmatpush1.bf16.msra.mxu0 0
    %374 = vmatprep.subr.bf16.mxu0 0
    %375 = vmatpush1.bf16.msra.mxu0 0
    %376 = vmatprep.mubr.bf16.mxu0 0
    %377 = vmatmul.mubr.bf16.gmra.mrb[0].mxu0 %v272
    %v378 = vpop.f32.mrb[0].mxu0
    %v379 = vadd.f32 %v243, %v378
    %v380 = vpop.f32.mrb[0].mxu0
    %v381 = vadd.f32 %v243, %v380
    %v382 = vpop.f32.mrb[0].mxu0
    %v383 = vadd.f32 %v248, %v382
    %v384 = vpop.f32.mrb[0].mxu0
    %v385 = vadd.f32 %v248, %v384
    %386 = vmatprep.mubr.bf16.mxu0 0
    %387 = vmatmul.mubr.bf16.gmra.mrb[0].mxu0 %v275
    %v388 = vpop.f32.mrb[0].mxu0
    %v389 = vadd.f32 %v253, %v388
    %v390 = vpop.f32.mrb[0].mxu0
    %v391 = vadd.f32 %v253, %v390
    %v392 = vpop.f32.mrb[0].mxu0
    %v393 = vadd.f32 %v258, %v392
    %v394 = vpop.f32.mrb[0].mxu0
    %v395 = vadd.f32 %v258, %v394
    %396 = vdwg.mxu0
    %v397 = vmul.f32 %v326, 0.2
    %v398 = vmul.f32 %v328, 0.2
    %v399 = vmul.f32 %v379, 0.2
    %v400 = vmul.f32 %v381, 0.2
    %v401 = vmul.f32 %v330, 0.2
    %v402 = vmul.f32 %v332, 0.2
    %v403 = vmul.f32 %v383, 0.2
    %v404 = vmul.f32 %v385, 0.2
    %v405 = vmul.f32 %v336, 0.2
    %v406 = vmul.f32 %v338, 0.2
    %v407 = vmul.f32 %v389, 0.2
    %v408 = vmul.f32 %v391, 0.2
    %v409 = vmul.f32 %v340, 0.2
    %v410 = vmul.f32 %v342, 0.2
    %v411 = vmul.f32 %v393, 0.2
    %v412 = vmul.f32 %v395, 0.2
    %v413 = vmax.f32 %v326, %v397
    %v414 = vmax.f32 %v328, %v398
    %v415 = vmax.f32 %v379, %v399
    %v416 = vmax.f32 %v381, %v400
    %v417 = vmax.f32 %v330, %v401
    %v418 = vmax.f32 %v332, %v402
    %v419 = vmax.f32 %v383, %v403
    %v420 = vmax.f32 %v385, %v404
    %v421 = vmax.f32 %v336, %v405
    %v422 = vmax.f32 %v338, %v406
    %v423 = vmax.f32 %v389, %v407
    %v424 = vmax.f32 %v391, %v408
    %v425 = vmax.f32 %v340, %v409
    %v426 = vmax.f32 %v342, %v410
    %v427 = vmax.f32 %v393, %v411
    %v428 = vmax.f32 %v395, %v412
    %v429 = vld [vmem:[%s5] sm:$0xf]
    %v430 = vld [vmem:[%s5 + $0x4] sm:$0xf]
    %v431 = vld [vmem:[%s5 + $0x8] sm:$0xf]
    %v432 = vld [vmem:[%s5 + $0xc] sm:$0xf]
    %v433 = vpack.c.bf16 %v417, %v413
    %v434 = vpack.c.bf16 %v418, %v414
    %v435 = vpack.c.bf16 %v419, %v415
    %v436 = vpack.c.bf16 %v420, %v416
    %v437 = vpack.c.bf16 %v425, %v421
    %v438 = vpack.c.bf16 %v426, %v422
    %v439 = vpack.c.bf16 %v427, %v423
    %v440 = vpack.c.bf16 %v428, %v424
    %v441 = vld [vmem:[%s6] sm:$0xff]
    %v442 = vld [vmem:[%s6 + $0x8] sm:$0xff]
    %v443 = vld [vmem:[%s6 + $0x10] sm:$0xff]
    %v444 = vld [vmem:[%s6 + $0x18] sm:$0xff]
    %446 = vset.pattern.permute.xlu0 0
    %447 = vperm.xlu0 %446, %v441
    %v448 = vpop.permute.xlu0 %447
    %451 = vset.pattern.permute.xlu0 0
    %452 = vperm.xlu0 %451, %v442
    %v453 = vpop.permute.xlu0 %452
    %456 = vset.pattern.permute.xlu0 0
    %457 = vperm.xlu0 %456, %v443
    %v458 = vpop.permute.xlu0 %457
    %461 = vset.pattern.permute.xlu0 0
    %462 = vperm.xlu0 %461, %v444
    %v463 = vpop.permute.xlu0 %462
    %v469 = vunpack.c.l.b16 %v429
    %v470 = vunpack.c.l.b16 %v430
    %v471 = vunpack.c.l.b16 %v431
    %v472 = vunpack.c.l.b16 %v432
    %v473 = vpack.c.b16 %v470, %v469
    %v474 = vpack.c.b16 %v472, %v471
    %vm475 = vcmask 261120
    %v477 = vsel %vm475, %v473, 0
    %v480 = vsel %vm475, %v474, 0
    %482 = vmatprep.subr.bf16.mxu0 %v434
    %483 = vmatpush1.bf16.msra.mxu0 %v433
    %484 = vmatprep.subr.bf16.mxu0 %v438
    %485 = vmatpush1.bf16.msra.mxu0 %v437
    %486 = vmatprep.subr.bf16.mxu0 0
    %487 = vmatpush1.bf16.msra.mxu0 0
    %488 = vmatprep.subr.bf16.mxu0 0
    %489 = vmatpush1.bf16.msra.mxu0 0
    %490 = vmatprep.subr.bf16.mxu0 0
    %491 = vmatpush1.bf16.msra.mxu0 0
    %492 = vmatprep.subr.bf16.mxu0 0
    %493 = vmatpush1.bf16.msra.mxu0 0
    %494 = vmatprep.subr.bf16.mxu0 0
    %495 = vmatpush1.bf16.msra.mxu0 0
    %496 = vmatprep.subr.bf16.mxu0 0
    %497 = vmatpush1.bf16.msra.mxu0 0
    %498 = vmatprep.subr.bf16.mxu0 0
    %499 = vmatpush1.bf16.msra.mxu0 0
    %500 = vmatprep.subr.bf16.mxu0 0
    %501 = vmatpush1.bf16.msra.mxu0 0
    %502 = vmatprep.subr.bf16.mxu0 0
    %503 = vmatpush1.bf16.msra.mxu0 0
    %504 = vmatprep.subr.bf16.mxu0 0
    %505 = vmatpush1.bf16.msra.mxu0 0
    %506 = vmatprep.subr.bf16.mxu0 0
    %507 = vmatpush1.bf16.msra.mxu0 0
    %508 = vmatprep.subr.bf16.mxu0 0
    %509 = vmatpush1.bf16.msra.mxu0 0
    %510 = vmatprep.subr.bf16.mxu0 0
    %511 = vmatpush1.bf16.msra.mxu0 0
    %512 = vmatprep.subr.bf16.mxu0 0
    %513 = vmatpush1.bf16.msra.mxu0 0
    %514 = vmatprep.mubr.bf16.mxu0 0
    %515 = vmatmul.mubr.bf16.gmra.mrb[0].mxu0 %v477
    %v516 = vpop.f32.mrb[0].mxu0
    %v517 = vadd.f32 %v448, %v516
    %v518 = vpop.f32.mrb[0].mxu0
    %v519 = vadd.f32 %v448, %v518
    %v520 = vpop.f32.mrb[0].mxu0
    %v521 = vadd.f32 %v453, %v520
    %v522 = vpop.f32.mrb[0].mxu0
    %v523 = vadd.f32 %v453, %v522
    %524 = vmatprep.mubr.bf16.mxu0 0
    %525 = vmatmul.mubr.bf16.gmra.mrb[0].mxu0 %v480
    %v526 = vpop.f32.mrb[0].mxu0
    %v527 = vadd.f32 %v458, %v526
    %v528 = vpop.f32.mrb[0].mxu0
    %v529 = vadd.f32 %v458, %v528
    %v530 = vpop.f32.mrb[0].mxu0
    %v531 = vadd.f32 %v463, %v530
    %v532 = vpop.f32.mrb[0].mxu0
    %v533 = vadd.f32 %v463, %v532
    %534 = vdwg.mxu0
    %535 = vmatprep.subr.bf16.mxu0 %v436
    %536 = vmatpush1.bf16.msra.mxu0 %v435
    %537 = vmatprep.subr.bf16.mxu0 %v440
    %538 = vmatpush1.bf16.msra.mxu0 %v439
    %539 = vmatprep.subr.bf16.mxu0 0
    %540 = vmatpush1.bf16.msra.mxu0 0
    %541 = vmatprep.subr.bf16.mxu0 0
    %542 = vmatpush1.bf16.msra.mxu0 0
    %543 = vmatprep.subr.bf16.mxu0 0
    %544 = vmatpush1.bf16.msra.mxu0 0
    %545 = vmatprep.subr.bf16.mxu0 0
    %546 = vmatpush1.bf16.msra.mxu0 0
    %547 = vmatprep.subr.bf16.mxu0 0
    %548 = vmatpush1.bf16.msra.mxu0 0
    %549 = vmatprep.subr.bf16.mxu0 0
    %550 = vmatpush1.bf16.msra.mxu0 0
    %551 = vmatprep.subr.bf16.mxu0 0
    %552 = vmatpush1.bf16.msra.mxu0 0
    %553 = vmatprep.subr.bf16.mxu0 0
    %554 = vmatpush1.bf16.msra.mxu0 0
    %555 = vmatprep.subr.bf16.mxu0 0
    %556 = vmatpush1.bf16.msra.mxu0 0
    %557 = vmatprep.subr.bf16.mxu0 0
    %558 = vmatpush1.bf16.msra.mxu0 0
    %559 = vmatprep.subr.bf16.mxu0 0
    %560 = vmatpush1.bf16.msra.mxu0 0
    %561 = vmatprep.subr.bf16.mxu0 0
    %562 = vmatpush1.bf16.msra.mxu0 0
    %563 = vmatprep.subr.bf16.mxu0 0
    %564 = vmatpush1.bf16.msra.mxu0 0
    %565 = vmatprep.subr.bf16.mxu0 0
    %566 = vmatpush1.bf16.msra.mxu0 0
    %567 = vmatprep.mubr.bf16.mxu0 0
    %568 = vmatmul.mubr.bf16.gmra.mrb[0].mxu0 %v477
    %v569 = vpop.f32.mrb[0].mxu0
    %v570 = vadd.f32 %v448, %v569
    %v571 = vpop.f32.mrb[0].mxu0
    %v572 = vadd.f32 %v448, %v571
    %v573 = vpop.f32.mrb[0].mxu0
    %v574 = vadd.f32 %v453, %v573
    %v575 = vpop.f32.mrb[0].mxu0
    %v576 = vadd.f32 %v453, %v575
    %577 = vmatprep.mubr.bf16.mxu0 0
    %578 = vmatmul.mubr.bf16.gmra.mrb[0].mxu0 %v480
    %v579 = vpop.f32.mrb[0].mxu0
    %v580 = vadd.f32 %v458, %v579
    %v581 = vpop.f32.mrb[0].mxu0
    %v582 = vadd.f32 %v458, %v581
    %v583 = vpop.f32.mrb[0].mxu0
    %v584 = vadd.f32 %v463, %v583
    %v585 = vpop.f32.mrb[0].mxu0
    %v586 = vadd.f32 %v463, %v585
    %587 = vdwg.mxu0
    %v588 = vmul.f32 %v517, 0.2
    %v589 = vmul.f32 %v519, 0.2
    %v590 = vmul.f32 %v570, 0.2
    %v591 = vmul.f32 %v572, 0.2
    %v592 = vmul.f32 %v521, 0.2
    %v593 = vmul.f32 %v523, 0.2
    %v594 = vmul.f32 %v574, 0.2
    %v595 = vmul.f32 %v576, 0.2
    %v596 = vmul.f32 %v527, 0.2
    %v597 = vmul.f32 %v529, 0.2
    %v598 = vmul.f32 %v580, 0.2
    %v599 = vmul.f32 %v582, 0.2
    %v600 = vmul.f32 %v531, 0.2
    %v601 = vmul.f32 %v533, 0.2
    %v602 = vmul.f32 %v584, 0.2
    %v603 = vmul.f32 %v586, 0.2
    %v604 = vmax.f32 %v517, %v588
    %v605 = vmax.f32 %v519, %v589
    %v606 = vmax.f32 %v570, %v590
    %v607 = vmax.f32 %v572, %v591
    %v608 = vmax.f32 %v521, %v592
    %v609 = vmax.f32 %v523, %v593
    %v610 = vmax.f32 %v574, %v594
    %v611 = vmax.f32 %v576, %v595
    %v612 = vmax.f32 %v527, %v596
    %v613 = vmax.f32 %v529, %v597
    %v614 = vmax.f32 %v580, %v598
    %v615 = vmax.f32 %v582, %v599
    %v616 = vmax.f32 %v531, %v600
    %v617 = vmax.f32 %v533, %v601
    %v618 = vmax.f32 %v584, %v602
    %v619 = vmax.f32 %v586, %v603
    %v620 = vld [vmem:[%s7] sm:$0xff]
    %v621 = vld [vmem:[%s7 + $0x8] sm:$0xff]
    %v622 = vld [vmem:[%s7 + $0x10] sm:$0xff]
    %v623 = vld [vmem:[%s7 + $0x18] sm:$0xff]
    %625 = vset.pattern.permute.xlu0 0
    %626 = vperm.xlu0 %625, %v620
    %v627 = vpop.permute.xlu0 %626
    %630 = vset.pattern.permute.xlu0 0
    %631 = vperm.xlu0 %630, %v621
    %v632 = vpop.permute.xlu0 %631
    %635 = vset.pattern.permute.xlu0 0
    %636 = vperm.xlu0 %635, %v622
    %v637 = vpop.permute.xlu0 %636
    %640 = vset.pattern.permute.xlu0 0
    %641 = vperm.xlu0 %640, %v623
    %v642 = vpop.permute.xlu0 %641
    %v644 = vmul.f32 %v627, %v604
    %v645 = vmul.f32 %v627, %v605
    %v646 = vmul.f32 %v627, %v606
    %v647 = vmul.f32 %v627, %v607
    %v648 = vmul.f32 %v632, %v608
    %v649 = vmul.f32 %v632, %v609
    %v650 = vmul.f32 %v632, %v610
    %v651 = vmul.f32 %v632, %v611
    %v652 = vmul.f32 %v637, %v612
    %v653 = vmul.f32 %v637, %v613
    %v654 = vmul.f32 %v637, %v614
    %v655 = vmul.f32 %v637, %v615
    %v656 = vmul.f32 %v642, %v616
    %v657 = vmul.f32 %v642, %v617
    %v658 = vmul.f32 %v642, %v618
    %v659 = vmul.f32 %v642, %v619
    %v660 = vadd.f32 %v644, %v648
    %v661 = vadd.f32 %v660, %v652
    %v662 = vadd.f32 %v661, %v656
    %v663 = vrot.slane %v662, 4
    %v664 = vadd.f32 %v662, %v663
    %v665 = vrot.slane %v664, 2
    %v666 = vadd.f32 %v664, %v665
    %v667 = vrot.slane %v666, 1
    %v668 = vadd.f32 %v666, %v667
    %v669 = vadd.f32 %v645, %v649
    %v670 = vadd.f32 %v669, %v653
    %v671 = vadd.f32 %v670, %v657
    %v672 = vrot.slane %v671, 4
    %v673 = vadd.f32 %v671, %v672
    %v674 = vrot.slane %v673, 2
    %v675 = vadd.f32 %v673, %v674
    %v676 = vrot.slane %v675, 1
    %v677 = vadd.f32 %v675, %v676
    %v678 = vadd.f32 %v646, %v650
    %v679 = vadd.f32 %v678, %v654
    %v680 = vadd.f32 %v679, %v658
    %v681 = vrot.slane %v680, 4
    %v682 = vadd.f32 %v680, %v681
    %v683 = vrot.slane %v682, 2
    %v684 = vadd.f32 %v682, %v683
    %v685 = vrot.slane %v684, 1
    %v686 = vadd.f32 %v684, %v685
    %v687 = vadd.f32 %v647, %v651
    %v688 = vadd.f32 %v687, %v655
    %v689 = vadd.f32 %v688, %v659
    %v690 = vrot.slane %v689, 4
    %v691 = vadd.f32 %v689, %v690
    %v692 = vrot.slane %v691, 2
    %v693 = vadd.f32 %v691, %v692
    %v694 = vrot.slane %v693, 1
    %v695 = vadd.f32 %v693, %v694
    %v696 = vld [vmem:[#allocation3] sm:$0x1]
    %698 = vset.pattern.permute.xlu0 0
    %699 = vperm.xlu0 %698, %v696
    %v700 = vpop.permute.xlu0 %699
    %v702 = vlaneseq
    %v703 = vshrl.u32 %v702, 7
    %v704 = vsub.s32 0, %v703
    %v705 = vrot.slane %v700, %v704
    %v706 = vadd.f32 %v668, %v705
    %v707 = vadd.f32 %v677, %v705
    %v708 = vadd.f32 %v686, %v705
    %v709 = vadd.f32 %v695, %v705
    %v710 = vadd.f32 %v95, 1.0
    %v711 = vmul.f32 %v710, 0.5
    %v712 = vmax.f32 %v706, 0.0
    %v713 = vmax.f32 %v707, 0.0
    %v714 = vmax.f32 %v708, 0.0
    %v715 = vmax.f32 %v709, 0.0
    %v716 = vand.u32 2147483647, %v706
    %v717 = vand.u32 2147483647, %v707
    %v718 = vand.u32 2147483647, %v708
    %v719 = vand.u32 2147483647, %v709
    %v720 = vsub.f32 0.0, %v716
    %v721 = vsub.f32 0.0, %v717
    %v722 = vsub.f32 0.0, %v718
    %v723 = vsub.f32 0.0, %v719
    %v724 = vmul.f32 %v720, 1.442695
    %v725 = vpow.pop %v724
    %v726 = vmul.f32 %v721, 1.442695
    %v727 = vpow.pop %v726
    %v728 = vmul.f32 %v722, 1.442695
    %v729 = vpow.pop %v728
    %v730 = vmul.f32 %v723, 1.442695
    %v731 = vpow.pop %v730
    %v732 = vadd.f32 %v725, 1.0
    %v733 = vadd.f32 %v727, 1.0
    %v734 = vadd.f32 %v729, 1.0
    %v735 = vadd.f32 %v731, 1.0
    %v736 = vlog2.pop %v732
    %v737 = vmul.f32 %v736, 0.6931472
    %v738 = vlog2.pop %v733
    %v739 = vmul.f32 %v738, 0.6931472
    %v740 = vlog2.pop %v734
    %v741 = vmul.f32 %v740, 0.6931472
    %v742 = vlog2.pop %v735
    %v743 = vmul.f32 %v742, 0.6931472
    %v744 = vadd.f32 %v712, %v737
    %v745 = vadd.f32 %v713, %v739
    %v746 = vadd.f32 %v714, %v741
    %v747 = vadd.f32 %v715, %v743
    %v752 = vcombine.low %v706, %v707
    %v753 = vcombine.low %v708, %v709
    %v755 = vunpack.c.l.s4 1966171168
    %v756 = vunpack.c.0.s8 %v755
    %v757 = vlaneseq
    %v758 = vshrl.u32 %v757, 7
    %v759 = vsub.s32 %v756, %v758
    %v760 = vrot.slane %v752, %v759
    %v762 = vunpack.c.l.s4 1966171168
    %v763 = vunpack.c.0.s8 %v762
    %v764 = vlaneseq
    %v765 = vshrl.u32 %v764, 7
    %v766 = vsub.s32 %v763, %v765
    %v767 = vrot.slane %v753, %v766
    %v768 = vcombine.low %v760, %v767
    %v770 = vunpack.c.l.s4 1966171168
    %v771 = vunpack.c.0.s8 %v770
    %v772 = vlaneseq
    %v773 = vshrl.u32 %v772, 7
    %v774 = vsub.s32 %v771, %v773
    %v775 = vrot.slane %v768, %v774
    %v777 = vmul.f32 %v711, %v775
    %v779 = vlaneseq
    %v780 = vshrl.u32 %v779, 7
    %v781 = vsub.s32 0, %v780
    %v782 = vrot.slane %v777, %v781
    %v783 = vlaneseq
    %v784 = vshrl.u32 %v783, 7
    %v785 = vsub.s32 1, %v784
    %v786 = vrot.slane %v777, %v785
    %v787 = vlaneseq
    %v788 = vshrl.u32 %v787, 7
    %v789 = vsub.s32 2, %v788
    %v790 = vrot.slane %v777, %v789
    %v791 = vlaneseq
    %v792 = vshrl.u32 %v791, 7
    %v793 = vsub.s32 3, %v792
    %v794 = vrot.slane %v777, %v793
    %v799 = vsub.f32 %v744, %v782
    %v800 = vsub.f32 %v745, %v786
    %v801 = vsub.f32 %v746, %v790
    %v802 = vsub.f32 %v747, %v794
    %v803 = vlaneseq
    %v804 = vand.u32 %v803, 127
    %v805 = vadd.s32 %v804, 128
    %v806 = vadd.s32 %v804, 256
    %v807 = vadd.s32 %v804, 384
    %s808 = sadd.s32 0, 0
    %s809 = smul.u32 %s808, 512
    %v810 = vstv %s809
    %v811 = vadd.s32 %v810, %v804
    %v812 = vadd.s32 %v810, %v805
    %v813 = vadd.s32 %v810, %v806
    %v814 = vadd.s32 %v810, %v807
    %vm815 = vcmp.lt.s32.totalorder %v811, 512
    %vm816 = vcmp.lt.s32.totalorder %v812, 512
    %vm817 = vcmp.lt.s32.totalorder %v813, 512
    %vm818 = vcmp.lt.s32.totalorder %v814, 512
    %v819 = vsel %vm815, %v799, 0.0
    %v820 = vsel %vm816, %v800, 0.0
    %v821 = vsel %vm817, %v801, 0.0
    %v822 = vsel %vm818, %v802, 0.0
    %p823 = scmp.eq.s32.totalorder 0, 0
    // Predicated region
    $region38: #{tpu_custom_call.1} parent=1 // pred_check
      %p824 = pneg %p823
    $region39: #{tpu_custom_call.1} parent=1 // pred_check_branch
      %826 = sbr.rel (%p824) target = $region41
    $region40: #{tpu_custom_call.1} parent=1 // pred_region
      %v827 = vlaneseq
      %vm828 = vcmp.ge.s32.totalorder %v827, 0
      %vm829 = vcmp.lt.s32.totalorder %v827, 512
      %vm830 = vmand %vm828, %vm829
      %831 = vst.msk [vmem:[#allocation2] sm:$0xf] %vm830, 0.0
    $region41: #{tpu_custom_call.1} parent=1 // pred_fallthru
      _
    %v832 = vld [vmem:[#allocation2] sm:$0xf]
    %v837 = vcombine.low %v819, %v820
    %v838 = vcombine.low %v821, %v822
    %v840 = vunpack.c.l.s4 1966171168
    %v841 = vunpack.c.0.s8 %v840
    %v842 = vlaneseq
    %v843 = vshrl.u32 %v842, 7
    %v844 = vsub.s32 %v841, %v843
    %v845 = vrot.slane %v837, %v844
    %v847 = vunpack.c.l.s4 1966171168
    %v848 = vunpack.c.0.s8 %v847
    %v849 = vlaneseq
    %v850 = vshrl.u32 %v849, 7
    %v851 = vsub.s32 %v848, %v850
    %v852 = vrot.slane %v838, %v851
    %v853 = vcombine.low %v845, %v852
    %v855 = vunpack.c.l.s4 1966171168
    %v856 = vunpack.c.0.s8 %v855
    %v857 = vlaneseq
    %v858 = vshrl.u32 %v857, 7
    %v859 = vsub.s32 %v856, %v858
    %v860 = vrot.slane %v853, %v859
    %v862 = vadd.f32 %v832, %v860
    %v863 = vlaneseq
    %vm864 = vcmp.ge.s32.totalorder %v863, 0
    %vm865 = vcmp.lt.s32.totalorder %v863, 512
    %vm866 = vmand %vm864, %vm865
    %867 = vst.msk [vmem:[#allocation2] sm:$0xf] %vm866, %v862
    // Predicated region
    $region42: #{tpu_custom_call.1} parent=1 // pred_check
      %p868 = pneg %p823
    $region43: #{tpu_custom_call.1} parent=1 // pred_check_branch
      %870 = sbr.rel (%p868) target = $region45
    $region44: #{tpu_custom_call.1} parent=1 // pred_region
      %v871 = vld [vmem:[#allocation2] sm:$0xf]
      %872 = vst.msk [vmem:[#allocation4] sm:$0xf] %vm866, %v871
    $region45: #{tpu_custom_call.1} parent=1 // pred_fallthru
      _
    // Predicated region
    $region46: #{tpu_custom_call.1} parent=1 // pred_check
      _
    $region47: #{tpu_custom_call.1} parent=1 // pred_check_branch
      %874 = sbr.rel (0) target = $region49
    $region48: #{tpu_custom_call.1} parent=1 // pred_region
      %s876 = ssub.s32 64, 64
      %877 = vsyncadd [#allocation5], %s876
      %s879 = sshll.u32 [#allocation4], 4
      %s880 = int_to_ptr.vmem [resolvable:$true] %s879
      %882 = dma.vmem_to_hbm [thread:$0]  %s880, 64, %s9, [#allocation5]
    $region49: #{tpu_custom_call.1} parent=1 // pred_fallthru
      _
    // Predicated region
    $region50: #{tpu_custom_call.1} parent=1 // pred_check
      _
    $region51: #{tpu_custom_call.1} parent=1 // pred_check_branch
      %884 = sbr.rel (0) target = $region53
    $region52: #{tpu_custom_call.1} parent=1 // pred_region
      %885 = dma.done [#allocation5], 64
    $region53: #{tpu_custom_call.1} parent=1 // pred_fallthru
      _
    %886 = vsyncpa [#allocation5], 1

</llo_original>
